<compile_context>
chip_gen: v7x
topology: tpu7x:2x2x1
jax: 0.10.0
libtpu: 0.0.40
codegen_flags: <defaults>
</compile_context>

<pallas_src>
import functools

import jax
import jax.numpy as jnp
from jax.experimental import pallas as pl
from jax.experimental.pallas import tpu as pltpu


def _round_up(x, m):
    return (x + m - 1) // m * m


def _pad2d(a, m0, m1):
    p0 = (-a.shape[0]) % m0
    p1 = (-a.shape[1]) % m1
    if p0 or p1:
        a = jnp.pad(a, ((0, p0), (0, p1)))
    return a


# ----------------------------- kernels --------------------------------------

def _linear_relu_single_kernel(x_ref, w_ref, b_ref, o_ref):
    # Whole K in one block: one MXU dot, bias + ReLU fused, single cast on store.
    acc = jnp.dot(x_ref[...], w_ref[...], preferred_element_type=jnp.float32)
    o_ref[...] = jnp.maximum(acc + b_ref[...], 0.0).astype(o_ref.dtype)


def _linear_relu_multik_f32_kernel(x_ref, w_ref, b_ref, o_ref):
    # f32 output: accumulate straight into the resident output block (no scratch).
    k = pl.program_id(2)

    @pl.when(k == 0)
    def _():
        o_ref[...] = jnp.zeros_like(o_ref)

    o_ref[...] += jnp.dot(x_ref[...], w_ref[...],
                          preferred_element_type=jnp.float32)

    @pl.when(k == pl.num_programs(2) - 1)
    def _():
        o_ref[...] = jnp.maximum(o_ref[...] + b_ref[...], 0.0)


def _linear_relu_multik_kernel(x_ref, w_ref, b_ref, o_ref, acc_ref):
    # Narrow output dtypes: f32 scratch accumulator, cast once on the last K step.
    k = pl.program_id(2)

    @pl.when(k == 0)
    def _():
        acc_ref[...] = jnp.zeros_like(acc_ref)

    acc_ref[...] += jnp.dot(x_ref[...], w_ref[...],
                            preferred_element_type=jnp.float32)

    @pl.when(k == pl.num_programs(2) - 1)
    def _():
        o_ref[...] = jnp.maximum(acc_ref[...] + b_ref[...], 0.0).astype(o_ref.dtype)


# ------------------------- tile / budget selection ---------------------------

_FAST_PATH_K = 2048     # bf16 K that comfortably fits in a single VMEM block
_MULTIK_TK = 512        # K tile when the reduction must be split
_MAX_TM = 256
_MAX_TN = 256


def _select_kn_tiles(K, N):
    """Tiles that depend only on the weight shape (chosen once, at module build)."""
    Np = _round_up(N, 128)
    tn = min(_MAX_TN, Np)
    # Keep >= 2 output tiles on the parallel axes so both v7x TensorCores get work.
    if Np == tn and Np >= 256:
        tn = 128
    Kp = _round_up(K, 128)
    tk = Kp if Kp <= _FAST_PATH_K else _MULTIK_TK
    return tn, tk


def _select_m_tile(M):
    # Cap at the (sublane-aligned) batch so small M doesn't pad up to a huge tile.
    return min(_MAX_TM, _round_up(M, 16))


def _vmem_limit_bytes(tm, tn, tk, out_itemsize, needs_scratch):
    # Double-buffered x, w, bias and out tiles (+ optional f32 accumulator),
    # with 2x headroom for compiler-internal scratch.  Always << v7x's 64 MiB.
    x_buf = tm * tk * 2
    w_buf = tk * tn * 2
    b_buf = tn * 4
    o_buf = tm * tn * out_itemsize
    total = 2 * (x_buf + w_buf + b_buf + o_buf)
    if needs_scratch:
        total += tm * tn * 4
    return int(min(max(2 * total, 16 * 1024 * 1024), 32 * 1024 * 1024))


# ------------------------------ wrapper --------------------------------------

@functools.partial(jax.jit, static_argnames=("tm", "tn", "tk", "n_out"))
def _linear_relu_fwd(x, wp, bp, *, tm, tn, tk, n_out):
    """relu(x @ w + b); wp/bp are pre-cast, pre-padded weights / bias."""
    M, K = x.shape
    Kp, Np = wp.shape
    out_dtype = x.dtype

    # Only the activation is cast/padded per call; weights were prepared once.
    xp = _pad2d(x.astype(jnp.bfloat16), tm, tk)
    Mp = xp.shape[0]
    assert xp.shape[1] == Kp

    grid_m, grid_n, grid_k = Mp // tm, Np // tn, Kp // tk

    cost = pl.CostEstimate(
        flops=2 * Mp * Kp * Np,
        transcendentals=0,
        bytes_accessed=(grid_n * xp.size * 2 + grid_m * wp.size * 2
                        + bp.size * 4
                        + Mp * Np * jnp.dtype(out_dtype).itemsize),
    )

    if grid_k == 1:
        # Fast path: whole K resident -> no accumulator, no init/finalize,
        # 2-D all-parallel grid.
        kernel = _linear_relu_single_kernel
        grid = (grid_m, grid_n)
        in_specs = [
            pl.BlockSpec((tm, tk), lambda i, j: (i, 0)),   # x tile
            pl.BlockSpec((tk, tn), lambda i, j: (0, j)),   # w tile
            pl.BlockSpec((1, tn), lambda i, j: (0, j)),    # bias tile
        ]
        out_specs = pl.BlockSpec((tm, tn), lambda i, j: (i, j))
        scratch_shapes = ()
        dim_sem = ("parallel", "parallel")
        needs_scratch = False
    else:
        grid = (grid_m, grid_n, grid_k)
        in_specs = [
            pl.BlockSpec((tm, tk), lambda i, j, k: (i, k)),
            pl.BlockSpec((tk, tn), lambda i, j, k: (k, j)),
            pl.BlockSpec((1, tn), lambda i, j, k: (0, j)),
        ]
        out_specs = pl.BlockSpec((tm, tn), lambda i, j, k: (i, j))
        dim_sem = ("parallel", "parallel", "arbitrary")
        if out_dtype == jnp.float32:
            kernel = _linear_relu_multik_f32_kernel
            scratch_shapes = ()
            needs_scratch = False
        else:
            kernel = _linear_relu_multik_kernel
            scratch_shapes = (pltpu.VMEM((tm, tn), jnp.float32),)
            needs_scratch = True

    out_p = pl.pallas_call(
        kernel,
        out_shape=jax.ShapeDtypeStruct((Mp, Np), out_dtype),
        grid=grid,
        in_specs=in_specs,
        out_specs=out_specs,
        scratch_shapes=scratch_shapes,
        compiler_params=pltpu.CompilerParams(
            dimension_semantics=dim_sem,
            vmem_limit_bytes=_vmem_limit_bytes(
                tm, tn, tk, jnp.dtype(out_dtype).itemsize, needs_scratch),
        ),
        cost_estimate=cost,
    )(xp, wp, bp)

    return out_p[:M, :n_out]


class LinearReLUPallas:
    """relu(x @ w + b): weights cast to bf16 and zero-padded ONCE at build time."""

    def __init__(self, w, b):
        K, N = w.shape
        assert b.shape == (N,)
        self.n_out = N
        self.tn, self.tk = _select_kn_tiles(K, N)
        self.wp = _pad2d(jnp.asarray(w, jnp.bfloat16), self.tk, self.tn)
        self.bp = _pad2d(jnp.asarray(b, jnp.float32).reshape(1, N), 1, self.tn)

    def __call__(self, x):
        tm = _select_m_tile(x.shape[0])
        return _linear_relu_fwd(x, self.wp, self.bp,
                                tm=tm, tn=self.tn, tk=self.tk, n_out=self.n_out)


class MimicDDPJax:
    """Mirror of MimicDDP: stores a module (callable) and forwards args verbatim."""

    def __init__(self, module):
        self.module = module

    def __call__(self, *args, **kwargs):
        return self.module(*args, **kwargs)


if __name__ == "__main__":
    key = jax.random.PRNGKey(0)
    kx, kw, kb = jax.random.split(key, 3)

    # Lane-dense, MXU-friendly demo shape (still small): 128x256 @ 256x256.
    batch, hidden = 128, 256

    x = jax.random.normal(kx, (batch, hidden), dtype=jnp.float32)
    w = jax.random.normal(kw, (hidden, hidden), dtype=jnp.float32) * 0.05
    b = jax.random.normal(kb, (hidden,), dtype=jnp.float32) * 0.1

    inner_module = LinearReLUPallas(w, b)
    ddp = MimicDDPJax(inner_module)      # MimicDDP.forward is a pure pass-through

    out = jax.block_until_ready(ddp(x))

    # Reference with the same bf16-input / f32-accumulate numerics.
    ref = jnp.maximum(
        jnp.dot(x.astype(jnp.bfloat16), w.astype(jnp.bfloat16),
                preferred_element_type=jnp.float32) + b,
        0.0,
    )
    assert out.shape == (batch, hidden)
    assert out.dtype == x.dtype
    assert jnp.allclose(out, ref, atol=2e-3, rtol=2e-3), float(
        jnp.max(jnp.abs(out - ref))
    )

    print("KERNEL_OK")
</pallas_src>

<mosaic_0001>
module attributes {stable_mosaic.version = 11 : i64} {
  func.func @_linear_relu_single_kernel(%arg0: i32, %arg1: i32, %arg2: memref<128x256xbf16, #tpu.memory_space<vmem>>, %arg3: memref<256x128xbf16, #tpu.memory_space<vmem>>, %arg4: memref<1x128xf32, #tpu.memory_space<vmem>>, %arg5: memref<128x128xf32, #tpu.memory_space<vmem>>) attributes {dimension_semantics = [#tpu.dimension_semantics<parallel>, #tpu.dimension_semantics<parallel>], iteration_bounds = array<i64: 1, 2>, scalar_prefetch = 0 : i64, scratch_operands = 0 : i64, tpu.core_type = #tpu.core_type<tc>, window_params = [{transform_indices = @transform_0, window_bounds = array<i64: 128, 256>}, {transform_indices = @transform_1, window_bounds = array<i64: 256, 128>}, {transform_indices = @transform_2, window_bounds = array<i64: 1, 128>}, {transform_indices = @transform_3, window_bounds = array<i64: 128, 128>}]} {
    %c0 = arith.constant 0 : index
    %c0_0 = arith.constant 0 : index
    %0 = vector.load %arg2[%c0, %c0_0] : memref<128x256xbf16, #tpu.memory_space<vmem>>, vector<128x256xbf16>
    %c0_1 = arith.constant 0 : index
    %c0_2 = arith.constant 0 : index
    %1 = vector.load %arg3[%c0_1, %c0_2] : memref<256x128xbf16, #tpu.memory_space<vmem>>, vector<256x128xbf16>
    %cst = arith.constant dense<0.000000e+00> : vector<128x128xf32>
    %2 = tpu.matmul %0, %1, %cst {dimension_numbers = #tpu.dot_dimension_numbers<[1], [0], [0], [1], [0, 0, 1, 1], [], []>} : vector<128x256xbf16>, vector<256x128xbf16>, vector<128x128xf32> -> vector<128x128xf32>
    %c0_3 = arith.constant 0 : index
    %c0_4 = arith.constant 0 : index
    %3 = vector.load %arg4[%c0_3, %c0_4] : memref<1x128xf32, #tpu.memory_space<vmem>>, vector<1x128xf32>
    %4 = vector.broadcast %3 : vector<1x128xf32> to vector<128x128xf32>
    %5 = arith.addf %2, %4 : vector<128x128xf32>
    %cst_5 = arith.constant 0.000000e+00 : f32
    %6 = vector.broadcast %cst_5 : f32 to vector<128x128xf32>
    %7 = arith.maximumf %5, %6 : vector<128x128xf32>
    %c0_6 = arith.constant 0 : index
    %c0_7 = arith.constant 0 : index
    %8 = vector.load %arg5[%c0_6, %c0_7] : memref<128x128xf32, #tpu.memory_space<vmem>>, vector<128x128xf32>
    tpu.vector_store %arg5[%c0_6, %c0_7], %7 {strides = array<i32>} : memref<128x128xf32, #tpu.memory_space<vmem>>, vector<128x128xf32>,
    return
  }
  func.func @transform_0(%arg0: i32, %arg1: i32) -> (i32, i32) {
    %c0_i32 = arith.constant 0 : i32
    %c0_i32_0 = arith.constant 0 : i32
    return %arg0, %c0_i32 : i32, i32
  }
  func.func @transform_1(%arg0: i32, %arg1: i32) -> (i32, i32) {
    %c0_i32 = arith.constant 0 : i32
    %c0_i32_0 = arith.constant 0 : i32
    return %c0_i32, %arg1 : i32, i32
  }
  func.func @transform_2(%arg0: i32, %arg1: i32) -> (i32, i32) {
    %c0_i32 = arith.constant 0 : i32
    %c0_i32_0 = arith.constant 0 : i32
    return %c0_i32, %arg1 : i32, i32
  }
  func.func @transform_3(%arg0: i32, %arg1: i32) -> (i32, i32) {
    %c0_i32 = arith.constant 0 : i32
    return %arg0, %arg1 : i32, i32
  }
}

</mosaic_0001>

<llo_original>
// kernel: _linear_relu_fwd.1
$region0: #{_linear_relu_fwd.1}
  #allocation0 [shape = 'u32[]', space=smem, size = 0x4, offset = 0x4, fixed_abs, tag = 'smem constant byte address 0x4 - core index']
  #allocation1 [shape = 'u32[144,128]{1,0:T(1,128)}', space=vmem, size = 0x12000, scoped, tag = 'internal scratch']
  %s0 = inlined_call_operand.vmem [shape: bf16[128,256], index: 0, kind: input, shape index: {}]
  %s1 = inlined_call_operand.vmem [shape: bf16[256,256], index: 1, kind: input, shape index: {}]
  %s2 = inlined_call_operand.vmem [shape: f32[1,256], index: 2, kind: input, shape index: {}]
  %s3 = inlined_call_operand.hbm [shape: f32[128,256], index: 3, kind: output, shape index: {}]
  %s4 = sld [smem:[#allocation0]]
  $region86: #{_linear_relu_fwd.1} parent=0
    _
  %s6 = ssub.s32 1, %s4
  %s7 = scalar_select 0, %s6, %s4
  $region1: #{_linear_relu_fwd.1} parent=0
    #allocation2 [shape = 'u8[131072]{0}', space=vmem, size = 0x20000, scoped, tag = 'input window, operand 1']
    #allocation3 [shape = 'u8[131072]{0}', space=vmem, size = 0x20000, scoped, tag = 'output window, operand 0']
    #allocation4 [shape = 's32[2]{0}', space=sflag, size = 0x8, scoped, tag = 'scoped memory for _linear_relu_fwd.1']
    %8 = vsyncpa [#allocation4], 0
    %s9 = scalar_lea.sflag [#allocation4], 1
    %10 = vsyncpa %s9, 0
    loop: start=0, step=1, limit=4
    $region2: #{_linear_relu_fwd.1} parent=1 // loop_pre_header
      _
    $region3: #{_linear_relu_fwd.1} parent=1 // loop_header
      %s12 = sphi 0, %s16
      %p13 = scmp.ge.s32.totalorder %s12, 4
      %s19 = sphi 0, %s31
      %s20 = sphi 0, %s27
      %s21 = sphi 0, %s19
      %s22 = sphi 0, %s20
      %s23 = sphi 0, %s21
      %s24 = sphi 0, %s22
      %s34 = sphi 0, %s36
      %s37 = sphi 0, %s34
      %s38 = sphi 0, %s37
      %s54 = sphi 0, %s38
      %s60 = sphi 0, %s62
      %s63 = sphi 0, %s60
      %s64 = sphi 0, %s63
      %s80 = sphi 0, %s64
      %s86 = sphi 0, %s88
      %s89 = sphi 0, %s86
      %s90 = sphi 0, %s89
      %s106 = sphi 0, %s90
      %s114 = sphi 0, %s116
      %s117 = sphi 0, %s114
      %s118 = sphi 0, %s117
      %s134 = sphi 0, %s118
    $region4: #{_linear_relu_fwd.1} parent=1 // loop_header_branch
      %15 = sbr.rel (%p13) target = $region8
    $region5: #{_linear_relu_fwd.1} parent=1 // loop_body
      %s17 = ssub.s32 %s12, 1
      %s18 = ssub.s32 %s12, 2
      %s25 = sadd.s32 1, %s20
      %p26 = scmp.ge.s32.totalorder %s25, 2
      %s27 = scalar_select %p26, 0, %s25
      %s28 = sadd.s32 1, %s19
      %s29 = scalar_select %p26, %s28, %s19
      %p30 = scmp.ge.s32.totalorder %s29, 1
      %s31 = scalar_select %p30, 0, %s29
      %s32 = ssub.s32 %s19, %s31
      %p33 = scmp.eq.s32.totalorder %s32, 0
      %s35 = sadd.s32 %s34, 1
      %s36 = scalar_select %p33, %s34, %s35
      %p39 = pneg %p33
      %p40 = scmp.eq.s32.totalorder %s12, 1
      %p41 = por %p39, %p40
      %p42 = scmp.ne.s32.totalorder %s34, %s37
      %p43 = scmp.eq.s32.totalorder %s12, 0
      %p44 = por %p42, %p43
      %p45 = scmp.ne.s32.totalorder %s34, %s37
      %p46 = scmp.eq.s32.totalorder %s17, 1
      %p47 = por %p45, %p46
      %p48 = scmp.ne.s32.totalorder %s37, %s38
      %p49 = scmp.eq.s32.totalorder %s17, 0
      %p50 = por %p48, %p49
      %p51 = scmp.ne.s32.totalorder %s37, %s38
      %p52 = scmp.eq.s32.totalorder %s18, 1
      %p53 = por %p51, %p52
      %p55 = scmp.ne.s32.totalorder %s38, %s54
      %p56 = scmp.eq.s32.totalorder %s18, 0
      %p57 = por %p55, %p56
      %s58 = ssub.s32 %s20, %s27
      %p59 = scmp.eq.s32.totalorder %s58, 0
      %s61 = sadd.s32 %s60, 1
      %s62 = scalar_select %p59, %s60, %s61
      %p65 = pneg %p59
      %p66 = scmp.eq.s32.totalorder %s12, 1
      %p67 = por %p65, %p66
      %p68 = scmp.ne.s32.totalorder %s60, %s63
      %p69 = scmp.eq.s32.totalorder %s12, 0
      %p70 = por %p68, %p69
      %p71 = scmp.ne.s32.totalorder %s60, %s63
      %p72 = scmp.eq.s32.totalorder %s17, 1
      %p73 = por %p71, %p72
      %p74 = scmp.ne.s32.totalorder %s63, %s64
      %p75 = scmp.eq.s32.totalorder %s17, 0
      %p76 = por %p74, %p75
      %p77 = scmp.ne.s32.totalorder %s63, %s64
      %p78 = scmp.eq.s32.totalorder %s18, 1
      %p79 = por %p77, %p78
      %p81 = scmp.ne.s32.totalorder %s64, %s80
      %p82 = scmp.eq.s32.totalorder %s18, 0
      %p83 = por %p81, %p82
      %s84 = ssub.s32 %s20, %s27
      %p85 = scmp.eq.s32.totalorder %s84, 0
      %s87 = sadd.s32 %s86, 1
      %s88 = scalar_select %p85, %s86, %s87
      %p91 = pneg %p85
      %p92 = scmp.eq.s32.totalorder %s12, 1
      %p93 = por %p91, %p92
      %p94 = scmp.ne.s32.totalorder %s86, %s89
      %p95 = scmp.eq.s32.totalorder %s12, 0
      %p96 = por %p94, %p95
      %p97 = scmp.ne.s32.totalorder %s86, %s89
      %p98 = scmp.eq.s32.totalorder %s17, 1
      %p99 = por %p97, %p98
      %p100 = scmp.ne.s32.totalorder %s89, %s90
      %p101 = scmp.eq.s32.totalorder %s17, 0
      %p102 = por %p100, %p101
      %p103 = scmp.ne.s32.totalorder %s89, %s90
      %p104 = scmp.eq.s32.totalorder %s18, 1
      %p105 = por %p103, %p104
      %p107 = scmp.ne.s32.totalorder %s90, %s106
      %p108 = scmp.eq.s32.totalorder %s18, 0
      %p109 = por %p107, %p108
      %s110 = ssub.s32 %s19, %s31
      %s111 = ssub.s32 %s20, %s27
      %s112 = sor.u32 %s110, %s111
      %p113 = scmp.eq.s32.totalorder %s112, 0
      %s115 = sadd.s32 %s114, 1
      %s116 = scalar_select %p113, %s114, %s115
      %p119 = pneg %p113
      %p120 = scmp.eq.s32.totalorder %s12, 1
      %p121 = por %p119, %p120
      %p122 = scmp.ne.s32.totalorder %s114, %s117
      %p123 = scmp.eq.s32.totalorder %s12, 0
      %p124 = por %p122, %p123
      %p125 = scmp.ne.s32.totalorder %s114, %s117
      %p126 = scmp.eq.s32.totalorder %s17, 1
      %p127 = por %p125, %p126
      %p128 = scmp.ne.s32.totalorder %s117, %s118
      %p129 = scmp.eq.s32.totalorder %s17, 0
      %p130 = por %p128, %p129
      %p131 = scmp.ne.s32.totalorder %s117, %s118
      %p132 = scmp.eq.s32.totalorder %s18, 1
      %p133 = por %p131, %p132
      %p135 = scmp.ne.s32.totalorder %s118, %s134
      %p136 = scmp.eq.s32.totalorder %s18, 0
      %p137 = por %p135, %p136
      %p138 = scmp.le.s32.totalorder 1, %s12
      %p139 = scmp.lt.s32.totalorder %s12, 3
      %p140 = pnand %p138, %p139
      %p141 = pneg %p140
      // Predicated region
      $region9: #{_linear_relu_fwd.1} parent=5 // pred_check
        _
      $region10: #{_linear_relu_fwd.1} parent=5 // pred_check_branch
        %143 = sbr.rel (%p140) target = $region12
      $region11: #{_linear_relu_fwd.1} parent=5 // pred_region
        %s144 = ssub.s32 %s12, 1
        // Predicated region
        $region13: #{_linear_relu_fwd.1} parent=11 // pred_check
          %p145 = pneg %p50
        $region14: #{_linear_relu_fwd.1} parent=11 // pred_check_branch
          %147 = sbr.rel (%p145) target = $region16
        $region15: #{_linear_relu_fwd.1} parent=11 // pred_region
          %s148 = smul.u32 16, %s21
          %p149 = scmp.lt.s32.totalorder %s148, 15
          %s150 = scalar_select %p149, %s148, 15
          %s151 = smul.addr %s150, 2
          %s152 = smul.addr %s151, 4
          %s153 = scalar_lea.vmem %s0, %s152
          %s154 = smul.u32 16, %s21
        $region16: #{_linear_relu_fwd.1} parent=11 // pred_fallthru
          _
      $region12: #{_linear_relu_fwd.1} parent=5 // pred_fallthru
        _
      %p155 = scmp.lt.s32.totalorder %s12, 2
      // Predicated region
      $region17: #{_linear_relu_fwd.1} parent=5 // pred_check
        %p156 = pneg %p155
      $region18: #{_linear_relu_fwd.1} parent=5 // pred_check_branch
        %158 = sbr.rel (%p156) target = $region20
      $region19: #{_linear_relu_fwd.1} parent=5 // pred_region
        // Predicated region
        $region21: #{_linear_relu_fwd.1} parent=19 // pred_check
          %p159 = pneg %p70
        $region22: #{_linear_relu_fwd.1} parent=19 // pred_check_branch
          %161 = sbr.rel (%p159) target = $region24
        $region23: #{_linear_relu_fwd.1} parent=19 // pred_region
          %s162 = sand.u32 %s60, 1
          %s163 = sand.u32 %s60, 1
          %s164 = smul.addr %s163, 128
          %s165 = scalar_lea.vmem [#allocation2], %s164
          %s166 = smul.addr %s20, 4
          %s167 = scalar_lea.vmem %s1, %s166
          // Predicated region
          $region25: #{_linear_relu_fwd.1} parent=23 // pred_check
            _
          $region26: #{_linear_relu_fwd.1} parent=23 // pred_check_branch
            %169 = sbr.rel (0) target = $region28
          $region27: #{_linear_relu_fwd.1} parent=23 // pred_region
            // Predicated region
            $region29: #{_linear_relu_fwd.1} parent=27 // pred_check
              _
            $region30: #{_linear_relu_fwd.1} parent=27 // pred_check_branch
              %171 = sbr.rel target = $region32
            $region31: #{_linear_relu_fwd.1} parent=27 // pred_region
              // Predicated region
              $region44: #{_linear_relu_fwd.1} parent=31 // pred_check
                _
              $region45: #{_linear_relu_fwd.1} parent=31 // pred_check_branch
                %248 = sbr.rel (0) target = $region47
              $region46: #{_linear_relu_fwd.1} parent=31 // pred_region
                loop: start=0, step=1, limit=1
                $region48: #{_linear_relu_fwd.1} parent=46 // loop_pre_header
                  _
                $region49: #{_linear_relu_fwd.1} parent=46 // loop_header
                  %s250 = sphi 0, %s254
                  %p251 = scmp.ge.s32.totalorder %s250, 1
                  %s255 = sphi %s167, %s167
                  %s256 = sphi %s165, %s165
                $region50: #{_linear_relu_fwd.1} parent=46 // loop_header_branch
                  %253 = sbr.rel (%p251) target = $region54
                $region51: #{_linear_relu_fwd.1} parent=46 // loop_body
                  _
                $region52: #{_linear_relu_fwd.1} parent=46 // loop_footer
                  %s254 = sadd.s32 1, %s250
                $region53: #{_linear_relu_fwd.1} parent=46 // loop_footer_branch
                  %249 = sbr.rel target = $region49
                $region54: #{_linear_relu_fwd.1} parent=46 // loop_exit
                  _
                loop: start=0, step=1, limit=1
                $region55: #{_linear_relu_fwd.1} parent=46 // loop_pre_header
                  _
                $region56: #{_linear_relu_fwd.1} parent=46 // loop_header
                  %s259 = sphi 0, %s263
                  %p260 = scmp.ge.s32.totalorder %s259, 1
                  %s264 = sphi %s167, %s167
                  %s265 = sphi %s165, %s165
                $region57: #{_linear_relu_fwd.1} parent=46 // loop_header_branch
                  %262 = sbr.rel (%p260) target = $region61
                $region58: #{_linear_relu_fwd.1} parent=46 // loop_body
                  %v266 = vld [vmem:[%s264] sm:$0xf]
                  %267 = vst [vmem:[%s265] sm:$0xf] %v266
                  %v268 = vld [vmem:[%s264 + $0x8] sm:$0xf]
                  %269 = vst [vmem:[%s265 + $0x4] sm:$0xf] %v268
                  %v270 = vld [vmem:[%s264 + $0x10] sm:$0xf]
                  %271 = vst [vmem:[%s265 + $0x8] sm:$0xf] %v270
                  %v272 = vld [vmem:[%s264 + $0x18] sm:$0xf]
                  %273 = vst [vmem:[%s265 + $0xc] sm:$0xf] %v272
                  %v274 = vld [vmem:[%s264 + $0x20] sm:$0xf]
                  %275 = vst [vmem:[%s265 + $0x10] sm:$0xf] %v274
                  %v276 = vld [vmem:[%s264 + $0x28] sm:$0xf]
                  %277 = vst [vmem:[%s265 + $0x14] sm:$0xf] %v276
                  %v278 = vld [vmem:[%s264 + $0x30] sm:$0xf]
                  %279 = vst [vmem:[%s265 + $0x18] sm:$0xf] %v278
                  %v280 = vld [vmem:[%s264 + $0x38] sm:$0xf]
                  %281 = vst [vmem:[%s265 + $0x1c] sm:$0xf] %v280
                  %v282 = vld [vmem:[%s264 + $0x40] sm:$0xf]
                  %283 = vst [vmem:[%s265 + $0x20] sm:$0xf] %v282
                  %v284 = vld [vmem:[%s264 + $0x48] sm:$0xf]
                  %285 = vst [vmem:[%s265 + $0x24] sm:$0xf] %v284
                  %v286 = vld [vmem:[%s264 + $0x50] sm:$0xf]
                  %287 = vst [vmem:[%s265 + $0x28] sm:$0xf] %v286
                  %v288 = vld [vmem:[%s264 + $0x58] sm:$0xf]
                  %289 = vst [vmem:[%s265 + $0x2c] sm:$0xf] %v288
                  %v290 = vld [vmem:[%s264 + $0x60] sm:$0xf]
                  %291 = vst [vmem:[%s265 + $0x30] sm:$0xf] %v290
                  %v292 = vld [vmem:[%s264 + $0x68] sm:$0xf]
                  %293 = vst [vmem:[%s265 + $0x34] sm:$0xf] %v292
                  %v294 = vld [vmem:[%s264 + $0x70] sm:$0xf]
                  %295 = vst [vmem:[%s265 + $0x38] sm:$0xf] %v294
                  %v296 = vld [vmem:[%s264 + $0x78] sm:$0xf]
                  %297 = vst [vmem:[%s265 + $0x3c] sm:$0xf] %v296
                  %v298 = vld [vmem:[%s264 + $0x80] sm:$0xf]
                  %299 = vst [vmem:[%s265 + $0x40] sm:$0xf] %v298
                  %v300 = vld [vmem:[%s264 + $0x88] sm:$0xf]
                  %301 = vst [vmem:[%s265 + $0x44] sm:$0xf] %v300
                  %v302 = vld [vmem:[%s264 + $0x90] sm:$0xf]
                  %303 = vst [vmem:[%s265 + $0x48] sm:$0xf] %v302
                  %v304 = vld [vmem:[%s264 + $0x98] sm:$0xf]
                  %305 = vst [vmem:[%s265 + $0x4c] sm:$0xf] %v304
                  %v306 = vld [vmem:[%s264 + $0xa0] sm:$0xf]
                  %307 = vst [vmem:[%s265 + $0x50] sm:$0xf] %v306
                  %v308 = vld [vmem:[%s264 + $0xa8] sm:$0xf]
                  %309 = vst [vmem:[%s265 + $0x54] sm:$0xf] %v308
                  %v310 = vld [vmem:[%s264 + $0xb0] sm:$0xf]
                  %311 = vst [vmem:[%s265 + $0x58] sm:$0xf] %v310
                  %v312 = vld [vmem:[%s264 + $0xb8] sm:$0xf]
                  %313 = vst [vmem:[%s265 + $0x5c] sm:$0xf] %v312
                  %v314 = vld [vmem:[%s264 + $0xc0] sm:$0xf]
                  %315 = vst [vmem:[%s265 + $0x60] sm:$0xf] %v314
                  %v316 = vld [vmem:[%s264 + $0xc8] sm:$0xf]
                  %317 = vst [vmem:[%s265 + $0x64] sm:$0xf] %v316
                  %v318 = vld [vmem:[%s264 + $0xd0] sm:$0xf]
                  %319 = vst [vmem:[%s265 + $0x68] sm:$0xf] %v318
                  %v320 = vld [vmem:[%s264 + $0xd8] sm:$0xf]
                  %321 = vst [vmem:[%s265 + $0x6c] sm:$0xf] %v320
                  %v322 = vld [vmem:[%s264 + $0xe0] sm:$0xf]
                  %323 = vst [vmem:[%s265 + $0x70] sm:$0xf] %v322
                  %v324 = vld [vmem:[%s264 + $0xe8] sm:$0xf]
                  %325 = vst [vmem:[%s265 + $0x74] sm:$0xf] %v324
                  %v326 = vld [vmem:[%s264 + $0xf0] sm:$0xf]
                  %327 = vst [vmem:[%s265 + $0x78] sm:$0xf] %v326
                  %v328 = vld [vmem:[%s264 + $0xf8] sm:$0xf]
                  %329 = vst [vmem:[%s265 + $0x7c] sm:$0xf] %v328
                $region59: #{_linear_relu_fwd.1} parent=46 // loop_footer
                  %s263 = sadd.s32 1, %s259
                $region60: #{_linear_relu_fwd.1} parent=46 // loop_footer_branch
                  %258 = sbr.rel target = $region56
                $region61: #{_linear_relu_fwd.1} parent=46 // loop_exit
                  _
              $region47: #{_linear_relu_fwd.1} parent=31 // pred_fallthru
                _
            $region32: #{_linear_relu_fwd.1} parent=27 // pred_fallthru
              _
            // Predicated region
            $region33: #{_linear_relu_fwd.1} parent=27 // pred_check
              _
            $region34: #{_linear_relu_fwd.1} parent=27 // pred_check_branch
              %173 = sbr.rel (0) target = $region36
            $region35: #{_linear_relu_fwd.1} parent=27 // pred_region
              loop: start=0, step=1, limit=1
              $region37: #{_linear_relu_fwd.1} parent=35 // loop_pre_header
                _
              $region38: #{_linear_relu_fwd.1} parent=35 // loop_header
                %s176 = sphi 0, %s180
                %p177 = scmp.ge.s32.totalorder %s176, 1
                %s181 = sphi %s167, %s167
                %s182 = sphi %s165, %s165
              $region39: #{_linear_relu_fwd.1} parent=35 // loop_header_branch
                %179 = sbr.rel (%p177) target = $region43
              $region40: #{_linear_relu_fwd.1} parent=35 // loop_body
                %v183 = vld [vmem:[%s181] sm:$0xf]
                %184 = vst [vmem:[%s182] sm:$0xf] %v183
                %v185 = vld [vmem:[%s181 + $0x8] sm:$0xf]
                %186 = vst [vmem:[%s182 + $0x4] sm:$0xf] %v185
                %v187 = vld [vmem:[%s181 + $0x10] sm:$0xf]
                %188 = vst [vmem:[%s182 + $0x8] sm:$0xf] %v187
                %v189 = vld [vmem:[%s181 + $0x18] sm:$0xf]
                %190 = vst [vmem:[%s182 + $0xc] sm:$0xf] %v189
                %v191 = vld [vmem:[%s181 + $0x20] sm:$0xf]
                %192 = vst [vmem:[%s182 + $0x10] sm:$0xf] %v191
                %v193 = vld [vmem:[%s181 + $0x28] sm:$0xf]
                %194 = vst [vmem:[%s182 + $0x14] sm:$0xf] %v193
                %v195 = vld [vmem:[%s181 + $0x30] sm:$0xf]
                %196 = vst [vmem:[%s182 + $0x18] sm:$0xf] %v195
                %v197 = vld [vmem:[%s181 + $0x38] sm:$0xf]
                %198 = vst [vmem:[%s182 + $0x1c] sm:$0xf] %v197
                %v199 = vld [vmem:[%s181 + $0x40] sm:$0xf]
                %200 = vst [vmem:[%s182 + $0x20] sm:$0xf] %v199
                %v201 = vld [vmem:[%s181 + $0x48] sm:$0xf]
                %202 = vst [vmem:[%s182 + $0x24] sm:$0xf] %v201
                %v203 = vld [vmem:[%s181 + $0x50] sm:$0xf]
                %204 = vst [vmem:[%s182 + $0x28] sm:$0xf] %v203
                %v205 = vld [vmem:[%s181 + $0x58] sm:$0xf]
                %206 = vst [vmem:[%s182 + $0x2c] sm:$0xf] %v205
                %v207 = vld [vmem:[%s181 + $0x60] sm:$0xf]
                %208 = vst [vmem:[%s182 + $0x30] sm:$0xf] %v207
                %v209 = vld [vmem:[%s181 + $0x68] sm:$0xf]
                %210 = vst [vmem:[%s182 + $0x34] sm:$0xf] %v209
                %v211 = vld [vmem:[%s181 + $0x70] sm:$0xf]
                %212 = vst [vmem:[%s182 + $0x38] sm:$0xf] %v211
                %v213 = vld [vmem:[%s181 + $0x78] sm:$0xf]
                %214 = vst [vmem:[%s182 + $0x3c] sm:$0xf] %v213
                %v215 = vld [vmem:[%s181 + $0x80] sm:$0xf]
                %216 = vst [vmem:[%s182 + $0x40] sm:$0xf] %v215
                %v217 = vld [vmem:[%s181 + $0x88] sm:$0xf]
                %218 = vst [vmem:[%s182 + $0x44] sm:$0xf] %v217
                %v219 = vld [vmem:[%s181 + $0x90] sm:$0xf]
                %220 = vst [vmem:[%s182 + $0x48] sm:$0xf] %v219
                %v221 = vld [vmem:[%s181 + $0x98] sm:$0xf]
                %222 = vst [vmem:[%s182 + $0x4c] sm:$0xf] %v221
                %v223 = vld [vmem:[%s181 + $0xa0] sm:$0xf]
                %224 = vst [vmem:[%s182 + $0x50] sm:$0xf] %v223
                %v225 = vld [vmem:[%s181 + $0xa8] sm:$0xf]
                %226 = vst [vmem:[%s182 + $0x54] sm:$0xf] %v225
                %v227 = vld [vmem:[%s181 + $0xb0] sm:$0xf]
                %228 = vst [vmem:[%s182 + $0x58] sm:$0xf] %v227
                %v229 = vld [vmem:[%s181 + $0xb8] sm:$0xf]
                %230 = vst [vmem:[%s182 + $0x5c] sm:$0xf] %v229
                %v231 = vld [vmem:[%s181 + $0xc0] sm:$0xf]
                %232 = vst [vmem:[%s182 + $0x60] sm:$0xf] %v231
                %v233 = vld [vmem:[%s181 + $0xc8] sm:$0xf]
                %234 = vst [vmem:[%s182 + $0x64] sm:$0xf] %v233
                %v235 = vld [vmem:[%s181 + $0xd0] sm:$0xf]
                %236 = vst [vmem:[%s182 + $0x68] sm:$0xf] %v235
                %v237 = vld [vmem:[%s181 + $0xd8] sm:$0xf]
                %238 = vst [vmem:[%s182 + $0x6c] sm:$0xf] %v237
                %v239 = vld [vmem:[%s181 + $0xe0] sm:$0xf]
                %240 = vst [vmem:[%s182 + $0x70] sm:$0xf] %v239
                %v241 = vld [vmem:[%s181 + $0xe8] sm:$0xf]
                %242 = vst [vmem:[%s182 + $0x74] sm:$0xf] %v241
                %v243 = vld [vmem:[%s181 + $0xf0] sm:$0xf]
                %244 = vst [vmem:[%s182 + $0x78] sm:$0xf] %v243
                %v245 = vld [vmem:[%s181 + $0xf8] sm:$0xf]
                %246 = vst [vmem:[%s182 + $0x7c] sm:$0xf] %v245
              $region41: #{_linear_relu_fwd.1} parent=35 // loop_footer
                %s180 = sadd.s32 1, %s176
              $region42: #{_linear_relu_fwd.1} parent=35 // loop_footer_branch
                %175 = sbr.rel target = $region38
              $region43: #{_linear_relu_fwd.1} parent=35 // loop_exit
                _
            $region36: #{_linear_relu_fwd.1} parent=27 // pred_fallthru
              _
          $region28: #{_linear_relu_fwd.1} parent=23 // pred_fallthru
            _
          %330 = vnop
        $region24: #{_linear_relu_fwd.1} parent=19 // pred_fallthru
          _
        // Predicated region
        $region62: #{_linear_relu_fwd.1} parent=19 // pred_check
          %p331 = pneg %p96
        $region63: #{_linear_relu_fwd.1} parent=19 // pred_check_branch
          %333 = sbr.rel (%p331) target = $region65
        $region64: #{_linear_relu_fwd.1} parent=19 // pred_region
          %p334 = scmp.lt.s32.totalorder %s20, 1
          %s335 = scalar_select %p334, %s20, 1
          %s336 = scalar_lea.vmem %s2, %s335
        $region65: #{_linear_relu_fwd.1} parent=19 // pred_fallthru
          _
      $region20: #{_linear_relu_fwd.1} parent=5 // pred_fallthru
        _
      %p337 = scmp.le.s32.totalorder 1, %s12
      %p338 = scmp.lt.s32.totalorder %s12, 3
      %p339 = pnand %p337, %p338
      %p340 = pneg %p339
      // Predicated region
      $region66: #{_linear_relu_fwd.1} parent=5 // pred_check
        _
      $region67: #{_linear_relu_fwd.1} parent=5 // pred_check_branch
        %342 = sbr.rel (%p339) target = $region69
      $region68: #{_linear_relu_fwd.1} parent=5 // pred_region
        %s343 = ssub.s32 %s12, 1
        %s344 = sand.u32 %s63, 1
        %s345 = sand.u32 %s63, 1
        %s346 = smul.addr %s345, 128
        %s347 = scalar_lea.vmem [#allocation2], %s346
        // Predicated region
        $region70: #{_linear_relu_fwd.1} parent=68 // pred_check
          %p348 = pneg %p76
        $region71: #{_linear_relu_fwd.1} parent=68 // pred_check_branch
          %350 = sbr.rel (%p348) target = $region73
        $region72: #{_linear_relu_fwd.1} parent=68 // pred_region
          _
        $region73: #{_linear_relu_fwd.1} parent=68 // pred_fallthru
          _
        %s351 = smul.u32 16, %s21
        %p352 = scmp.lt.s32.totalorder %s351, 15
        %s353 = scalar_select %p352, %s351, 15
        %s354 = smul.addr %s353, 2
        %s355 = smul.addr %s354, 4
        %s356 = scalar_lea.vmem %s0, %s355
        %p357 = pneg %p50
        %p358 = pneg %p47
        %s359 = sand.u32 %s63, 1
        %s360 = sand.u32 %s63, 1
        %s361 = smul.addr %s360, 128
        %s362 = scalar_lea.vmem [#allocation2], %s361
        %p363 = pneg %p76
        %p364 = pneg %p73
        %p365 = scmp.lt.s32.totalorder %s22, 1
        %s366 = scalar_select %p365, %s22, 1
        %s367 = scalar_lea.vmem %s2, %s366
        %p368 = pneg %p102
        %p369 = pneg %p99
        %p370 = pneg %p130
        %p371 = pneg %p127
        %s372 = sand.u32 %s117, 1
        %s373 = scalar_lea.sflag [#allocation4], %s372
        %s374 = sand.u32 %s117, 1
        %s375 = smul.addr %s374, 128
        %s376 = scalar_lea.vmem [#allocation3], %s375
        %s377 = smul.u32 16, %s21
        %p378 = scmp.lt.s32.totalorder %s377, 15
        %s379 = scalar_select %p378, %s377, 15
        %s380 = smul.addr %s379, 2
        %s381 = smul.addr %s380, 4
        %s382 = scalar_lea.vmem %s0, %s381
        %s383 = smul.u32 16, %s21
        %p384 = scmp.lt.s32.totalorder %s22, 1
        %s385 = scalar_select %p384, %s22, 1
        %s386 = scalar_lea.vmem %s2, %s385
        %s387 = smul.u32 16, %s21
        %v389 = vld [vmem:[%s382] sm:$0xff]
        %v390 = vld [vmem:[%s382 + $0x8] sm:$0xff]
        %v391 = vld [vmem:[%s382 + $0x10] sm:$0xff]
        %v392 = vld [vmem:[%s382 + $0x18] sm:$0xff]
        %v393 = vld [vmem:[%s382 + $0x20] sm:$0xff]
        %v394 = vld [vmem:[%s382 + $0x28] sm:$0xff]
        %v395 = vld [vmem:[%s382 + $0x30] sm:$0xff]
        %v396 = vld [vmem:[%s382 + $0x38] sm:$0xff]
        %v397 = vld [vmem:[%s382 + $0x40] sm:$0xff]
        %v398 = vld [vmem:[%s382 + $0x48] sm:$0xff]
        %v399 = vld [vmem:[%s382 + $0x50] sm:$0xff]
        %v400 = vld [vmem:[%s382 + $0x58] sm:$0xff]
        %v401 = vld [vmem:[%s382 + $0x60] sm:$0xff]
        %v402 = vld [vmem:[%s382 + $0x68] sm:$0xff]
        %v403 = vld [vmem:[%s382 + $0x70] sm:$0xff]
        %v404 = vld [vmem:[%s382 + $0x78] sm:$0xff]
        %v405 = vld [vmem:[%s347] sm:$0xf]
        %v406 = vld [vmem:[%s347 + $0x4] sm:$0xf]
        %v407 = vld [vmem:[%s347 + $0x8] sm:$0xf]
        %v408 = vld [vmem:[%s347 + $0xc] sm:$0xf]
        %v409 = vld [vmem:[%s347 + $0x10] sm:$0xf]
        %v410 = vld [vmem:[%s347 + $0x14] sm:$0xf]
        %v411 = vld [vmem:[%s347 + $0x18] sm:$0xf]
        %v412 = vld [vmem:[%s347 + $0x1c] sm:$0xf]
        %v413 = vld [vmem:[%s347 + $0x20] sm:$0xf]
        %v414 = vld [vmem:[%s347 + $0x24] sm:$0xf]
        %v415 = vld [vmem:[%s347 + $0x28] sm:$0xf]
        %v416 = vld [vmem:[%s347 + $0x2c] sm:$0xf]
        %v417 = vld [vmem:[%s347 + $0x30] sm:$0xf]
        %v418 = vld [vmem:[%s347 + $0x34] sm:$0xf]
        %v419 = vld [vmem:[%s347 + $0x38] sm:$0xf]
        %v420 = vld [vmem:[%s347 + $0x3c] sm:$0xf]
        %v421 = vld [vmem:[%s347 + $0x40] sm:$0xf]
        %v422 = vld [vmem:[%s347 + $0x44] sm:$0xf]
        %v423 = vld [vmem:[%s347 + $0x48] sm:$0xf]
        %v424 = vld [vmem:[%s347 + $0x4c] sm:$0xf]
        %v425 = vld [vmem:[%s347 + $0x50] sm:$0xf]
        %v426 = vld [vmem:[%s347 + $0x54] sm:$0xf]
        %v427 = vld [vmem:[%s347 + $0x58] sm:$0xf]
        %v428 = vld [vmem:[%s347 + $0x5c] sm:$0xf]
        %v429 = vld [vmem:[%s347 + $0x60] sm:$0xf]
        %v430 = vld [vmem:[%s347 + $0x64] sm:$0xf]
        %v431 = vld [vmem:[%s347 + $0x68] sm:$0xf]
        %v432 = vld [vmem:[%s347 + $0x6c] sm:$0xf]
        %v433 = vld [vmem:[%s347 + $0x70] sm:$0xf]
        %v434 = vld [vmem:[%s347 + $0x74] sm:$0xf]
        %v435 = vld [vmem:[%s347 + $0x78] sm:$0xf]
        %v436 = vld [vmem:[%s347 + $0x7c] sm:$0xf]
        %v437 = vld [vmem:[%s386] sm:$0x1]
        %v439 = vlaneseq
        %v440 = vshrl.u32 %v439, 7
        %v441 = vsub.s32 0, %v440
        %v442 = vrot.slane %v437, %v441
        %v460 = vunpack.c.l.b16 %v389
        %v461 = vunpack.c.h.b16 %v389
        %v462 = vunpack.c.l.b16 %v390
        %v463 = vunpack.c.h.b16 %v390
        %v464 = vunpack.c.l.b16 %v391
        %v465 = vunpack.c.h.b16 %v391
        %v466 = vunpack.c.l.b16 %v392
        %v467 = vunpack.c.h.b16 %v392
        %v468 = vunpack.c.l.b16 %v393
        %v469 = vunpack.c.h.b16 %v393
        %v470 = vunpack.c.l.b16 %v394
        %v471 = vunpack.c.h.b16 %v394
        %v472 = vunpack.c.l.b16 %v395
        %v473 = vunpack.c.h.b16 %v395
        %v474 = vunpack.c.l.b16 %v396
        %v475 = vunpack.c.h.b16 %v396
        %v476 = vunpack.c.l.b16 %v397
        %v477 = vunpack.c.h.b16 %v397
        %v478 = vunpack.c.l.b16 %v398
        %v479 = vunpack.c.h.b16 %v398
        %v480 = vunpack.c.l.b16 %v399
        %v481 = vunpack.c.h.b16 %v399
        %v482 = vunpack.c.l.b16 %v400
        %v483 = vunpack.c.h.b16 %v400
        %v484 = vunpack.c.l.b16 %v401
        %v485 = vunpack.c.h.b16 %v401
        %v486 = vunpack.c.l.b16 %v402
        %v487 = vunpack.c.h.b16 %v402
        %v488 = vunpack.c.l.b16 %v403
        %v489 = vunpack.c.h.b16 %v403
        %v490 = vunpack.c.l.b16 %v404
        %v491 = vunpack.c.h.b16 %v404
        %v492 = vpack.c.b16 %v462, %v460
        %v493 = vpack.c.b16 %v463, %v461
        %v494 = vpack.c.b16 %v466, %v464
        %v495 = vpack.c.b16 %v467, %v465
        %v496 = vpack.c.b16 %v470, %v468
        %v497 = vpack.c.b16 %v471, %v469
        %v498 = vpack.c.b16 %v474, %v472
        %v499 = vpack.c.b16 %v475, %v473
        %v500 = vpack.c.b16 %v478, %v476
        %v501 = vpack.c.b16 %v479, %v477
        %v502 = vpack.c.b16 %v482, %v480
        %v503 = vpack.c.b16 %v483, %v481
        %v504 = vpack.c.b16 %v486, %v484
        %v505 = vpack.c.b16 %v487, %v485
        %v506 = vpack.c.b16 %v490, %v488
        %v507 = vpack.c.b16 %v491, %v489
        %v556 = vunpack.c.l.b16 %v405
        %v557 = vunpack.c.l.b16 %v406
        %v558 = vunpack.c.l.b16 %v407
        %v559 = vunpack.c.l.b16 %v408
        %v560 = vunpack.c.l.b16 %v409
        %v561 = vunpack.c.l.b16 %v410
        %v562 = vunpack.c.l.b16 %v411
        %v563 = vunpack.c.l.b16 %v412
        %v564 = vunpack.c.l.b16 %v413
        %v565 = vunpack.c.l.b16 %v414
        %v566 = vunpack.c.l.b16 %v415
        %v567 = vunpack.c.l.b16 %v416
        %v568 = vunpack.c.l.b16 %v417
        %v569 = vunpack.c.l.b16 %v418
        %v570 = vunpack.c.l.b16 %v419
        %v571 = vunpack.c.l.b16 %v420
        %v572 = vunpack.c.l.b16 %v421
        %v573 = vunpack.c.l.b16 %v422
        %v574 = vunpack.c.l.b16 %v423
        %v575 = vunpack.c.l.b16 %v424
        %v576 = vunpack.c.l.b16 %v425
        %v577 = vunpack.c.l.b16 %v426
        %v578 = vunpack.c.l.b16 %v427
        %v579 = vunpack.c.l.b16 %v428
        %v580 = vunpack.c.l.b16 %v429
        %v581 = vunpack.c.l.b16 %v430
        %v582 = vunpack.c.l.b16 %v431
        %v583 = vunpack.c.l.b16 %v432
        %v584 = vunpack.c.l.b16 %v433
        %v585 = vunpack.c.l.b16 %v434
        %v586 = vunpack.c.l.b16 %v435
        %v587 = vunpack.c.l.b16 %v436
        %v588 = vpack.c.b16 %v557, %v556
        %v589 = vpack.c.b16 %v559, %v558
        %v590 = vpack.c.b16 %v561, %v560
        %v591 = vpack.c.b16 %v563, %v562
        %v592 = vpack.c.b16 %v565, %v564
        %v593 = vpack.c.b16 %v567, %v566
        %v594 = vpack.c.b16 %v569, %v568
        %v595 = vpack.c.b16 %v571, %v570
        %v596 = vpack.c.b16 %v573, %v572
        %v597 = vpack.c.b16 %v575, %v574
        %v598 = vpack.c.b16 %v577, %v576
        %v599 = vpack.c.b16 %v579, %v578
        %v600 = vpack.c.b16 %v581, %v580
        %v601 = vpack.c.b16 %v583, %v582
        %v602 = vpack.c.b16 %v585, %v584
        %v603 = vpack.c.b16 %v587, %v586
        %620 = vmatprep.subr.bf16.mxu0 0
        %621 = vmatpush1.bf16.msra.mxu0 %v588
        %622 = vmatprep.subr.bf16.mxu0 0
        %623 = vmatpush1.bf16.msra.mxu0 %v589
        %624 = vmatprep.subr.bf16.mxu0 0
        %625 = vmatpush1.bf16.msra.mxu0 %v590
        %626 = vmatprep.subr.bf16.mxu0 0
        %627 = vmatpush1.bf16.msra.mxu0 %v591
        %628 = vmatprep.subr.bf16.mxu0 0
        %629 = vmatpush1.bf16.msra.mxu0 %v592
        %630 = vmatprep.subr.bf16.mxu0 0
        %631 = vmatpush1.bf16.msra.mxu0 %v593
        %632 = vmatprep.subr.bf16.mxu0 0
        %633 = vmatpush1.bf16.msra.mxu0 %v594
        %634 = vmatprep.subr.bf16.mxu0 0
        %635 = vmatpush1.bf16.msra.mxu0 %v595
        %636 = vmatprep.subr.bf16.mxu0 0
        %637 = vmatpush1.bf16.msra.mxu0 %v596
        %638 = vmatprep.subr.bf16.mxu0 0
        %639 = vmatpush1.bf16.msra.mxu0 %v597
        %640 = vmatprep.subr.bf16.mxu0 0
        %641 = vmatpush1.bf16.msra.mxu0 %v598
        %642 = vmatprep.subr.bf16.mxu0 0
        %643 = vmatpush1.bf16.msra.mxu0 %v599
        %644 = vmatprep.subr.bf16.mxu0 0
        %645 = vmatpush1.bf16.msra.mxu0 %v600
        %646 = vmatprep.subr.bf16.mxu0 0
        %647 = vmatpush1.bf16.msra.mxu0 %v601
        %648 = vmatprep.subr.bf16.mxu0 0
        %649 = vmatpush1.bf16.msra.mxu0 %v602
        %650 = vmatprep.subr.bf16.mxu0 0
        %651 = vmatpush1.bf16.msra.mxu0 %v603
        %652 = vmatprep.mubr.bf16.mxu0 %v493
        %653 = vmatmul.mubr.bf16.gmra.mrb[0].mxu0 %v492
        %v654 = vpop.f32.mrb[0].mxu0
        %v655 = vadd.f32 %v442, %v654
        %v656 = vpop.f32.mrb[0].mxu0
        %v657 = vpop.f32.mrb[0].mxu0
        %v658 = vadd.f32 %v442, %v657
        %v659 = vpop.f32.mrb[0].mxu0
        %660 = vmatprep.mubr.bf16.mxu0 %v495
        %661 = vmatmul.mubr.bf16.gmra.mrb[0].mxu0 %v494
        %v662 = vpop.f32.mrb[0].mxu0
        %v663 = vadd.f32 %v442, %v662
        %v664 = vpop.f32.mrb[0].mxu0
        %v665 = vpop.f32.mrb[0].mxu0
        %v666 = vadd.f32 %v442, %v665
        %v667 = vpop.f32.mrb[0].mxu0
        %668 = vmatprep.mubr.bf16.mxu0 %v497
        %669 = vmatmul.mubr.bf16.gmra.mrb[0].mxu0 %v496
        %v670 = vpop.f32.mrb[0].mxu0
        %v671 = vadd.f32 %v442, %v670
        %v672 = vpop.f32.mrb[0].mxu0
        %v673 = vpop.f32.mrb[0].mxu0
        %v674 = vadd.f32 %v442, %v673
        %v675 = vpop.f32.mrb[0].mxu0
        %676 = vmatprep.mubr.bf16.mxu0 %v499
        %677 = vmatmul.mubr.bf16.gmra.mrb[0].mxu0 %v498
        %v678 = vpop.f32.mrb[0].mxu0
        %v679 = vadd.f32 %v442, %v678
        %v680 = vpop.f32.mrb[0].mxu0
        %v681 = vpop.f32.mrb[0].mxu0
        %v682 = vadd.f32 %v442, %v681
        %v683 = vpop.f32.mrb[0].mxu0
        %684 = vmatprep.mubr.bf16.mxu0 %v501
        %685 = vmatmul.mubr.bf16.gmra.mrb[0].mxu0 %v500
        %v686 = vpop.f32.mrb[0].mxu0
        %v687 = vadd.f32 %v442, %v686
        %v688 = vpop.f32.mrb[0].mxu0
        %v689 = vpop.f32.mrb[0].mxu0
        %v690 = vadd.f32 %v442, %v689
        %v691 = vpop.f32.mrb[0].mxu0
        %692 = vmatprep.mubr.bf16.mxu0 %v503
        %693 = vmatmul.mubr.bf16.gmra.mrb[0].mxu0 %v502
        %v694 = vpop.f32.mrb[0].mxu0
        %v695 = vadd.f32 %v442, %v694
        %v696 = vpop.f32.mrb[0].mxu0
        %v697 = vpop.f32.mrb[0].mxu0
        %v698 = vadd.f32 %v442, %v697
        %v699 = vpop.f32.mrb[0].mxu0
        %700 = vmatprep.mubr.bf16.mxu0 %v505
        %701 = vmatmul.mubr.bf16.gmra.mrb[0].mxu0 %v504
        %v702 = vpop.f32.mrb[0].mxu0
        %v703 = vadd.f32 %v442, %v702
        %v704 = vpop.f32.mrb[0].mxu0
        %v705 = vpop.f32.mrb[0].mxu0
        %v706 = vadd.f32 %v442, %v705
        %v707 = vpop.f32.mrb[0].mxu0
        %708 = vmatprep.mubr.bf16.mxu0 %v507
        %709 = vmatmul.mubr.bf16.gmra.mrb[0].mxu0 %v506
        %v710 = vpop.f32.mrb[0].mxu0
        %v711 = vadd.f32 %v442, %v710
        %v712 = vpop.f32.mrb[0].mxu0
        %v713 = vpop.f32.mrb[0].mxu0
        %v714 = vadd.f32 %v442, %v713
        %v715 = vpop.f32.mrb[0].mxu0
        %716 = vdwg.mxu0
        %v717 = vmax.f32 %v655, 0.0
        %v718 = vmax.f32 %v658, 0.0
        %v719 = vmax.f32 %v663, 0.0
        %v720 = vmax.f32 %v666, 0.0
        %v721 = vmax.f32 %v671, 0.0
        %v722 = vmax.f32 %v674, 0.0
        %v723 = vmax.f32 %v679, 0.0
        %v724 = vmax.f32 %v682, 0.0
        %v725 = vmax.f32 %v687, 0.0
        %v726 = vmax.f32 %v690, 0.0
        %v727 = vmax.f32 %v695, 0.0
        %v728 = vmax.f32 %v698, 0.0
        %v729 = vmax.f32 %v703, 0.0
        %v730 = vmax.f32 %v706, 0.0
        %v731 = vmax.f32 %v711, 0.0
        %v732 = vmax.f32 %v714, 0.0
        %733 = vst [vmem:[%s376] sm:$0xff] %v717
        %734 = vst [vmem:[%s376 + $0x8] sm:$0xff] %v718
        %735 = vst [vmem:[%s376 + $0x10] sm:$0xff] %v719
        %736 = vst [vmem:[%s376 + $0x18] sm:$0xff] %v720
        %737 = vst [vmem:[%s376 + $0x20] sm:$0xff] %v721
        %738 = vst [vmem:[%s376 + $0x28] sm:$0xff] %v722
        %739 = vst [vmem:[%s376 + $0x30] sm:$0xff] %v723
        %740 = vst [vmem:[%s376 + $0x38] sm:$0xff] %v724
        %741 = vst [vmem:[%s376 + $0x40] sm:$0xff] %v725
        %742 = vst [vmem:[%s376 + $0x48] sm:$0xff] %v726
        %743 = vst [vmem:[%s376 + $0x50] sm:$0xff] %v727
        %744 = vst [vmem:[%s376 + $0x58] sm:$0xff] %v728
        %745 = vst [vmem:[%s376 + $0x60] sm:$0xff] %v729
        %746 = vst [vmem:[%s376 + $0x68] sm:$0xff] %v730
        %747 = vst [vmem:[%s376 + $0x70] sm:$0xff] %v731
        %748 = vst [vmem:[%s376 + $0x78] sm:$0xff] %v732
        %s749 = sand.u32 %s117, 1
        %s750 = scalar_lea.sflag [#allocation4], %s749
        %s751 = sand.u32 %s117, 1
        %s752 = smul.addr %s751, 128
        %s753 = scalar_lea.vmem [#allocation3], %s752
        // Predicated region
        $region74: #{_linear_relu_fwd.1} parent=68 // pred_check
          %p754 = pneg %p127
        $region75: #{_linear_relu_fwd.1} parent=68 // pred_check_branch
          %756 = sbr.rel (%p754) target = $region77
        $region76: #{_linear_relu_fwd.1} parent=68 // pred_region
          %s757 = smul.u32 16, %s21
          %s759 = ssub.s32 2048, 2048
          %760 = vsyncadd %s750, %s759
          %s761 = smul.addr %s757, 2
          %s762 = sadd.s32 %s22, %s761
          %s763 = smul.addr %s762, 128
          %s764 = scalar_lea.hbm %s3, %s763
          %s765 = sshll.u32 %s753, 4
          %s766 = int_to_ptr.vmem [resolvable:$true] %s765
          %771 = dma.vmem_to_hbm [thread:$0]  %s766, 2048, %s764, %s750, 128, 256, 8
        $region77: #{_linear_relu_fwd.1} parent=68 // pred_fallthru
          _
      $region69: #{_linear_relu_fwd.1} parent=5 // pred_fallthru
        _
      %p772 = scmp.le.s32.totalorder 2, %s12
      // Predicated region
      $region78: #{_linear_relu_fwd.1} parent=5 // pred_check
        %p773 = pneg %p772
      $region79: #{_linear_relu_fwd.1} parent=5 // pred_check_branch
        %775 = sbr.rel (%p773) target = $region81
      $region80: #{_linear_relu_fwd.1} parent=5 // pred_region
        %s776 = ssub.s32 %s12, 2
        // Predicated region
        $region82: #{_linear_relu_fwd.1} parent=80 // pred_check
          %p777 = pneg %p133
        $region83: #{_linear_relu_fwd.1} parent=80 // pred_check_branch
          %779 = sbr.rel (%p777) target = $region85
        $region84: #{_linear_relu_fwd.1} parent=80 // pred_region
          %s780 = sand.u32 %s118, 1
          %s781 = scalar_lea.sflag [#allocation4], %s780
          %s782 = sand.u32 %s118, 1
          %s783 = smul.addr %s782, 128
          %s784 = scalar_lea.vmem [#allocation3], %s783
          %785 = dma.done %s781, 2048
        $region85: #{_linear_relu_fwd.1} parent=80 // pred_fallthru
          _
      $region81: #{_linear_relu_fwd.1} parent=5 // pred_fallthru
        _
    $region6: #{_linear_relu_fwd.1} parent=1 // loop_footer
      %s16 = sadd.s32 1, %s12
    $region7: #{_linear_relu_fwd.1} parent=1 // loop_footer_branch
      %11 = sbr.rel target = $region3
    $region8: #{_linear_relu_fwd.1} parent=1 // loop_exit
      _
    %786 = vsyncpa [#allocation4], 1
    %s787 = scalar_lea.sflag [#allocation4], 1
    %788 = vsyncpa %s787, 1

</llo_original>
